<compile_context>
chip_gen: v7x
topology: tpu7x:2x2x1
jax: 0.10.0
libtpu: 0.0.40
codegen_flags: <defaults>
</compile_context>

<pallas_src>
import numpy as np
import jax
import jax.numpy as jnp
from jax.experimental import pallas as pl
from jax.experimental.pallas import tpu as pltpu

_LANE = 128


def net_kernel(x_ref, w_ref, b_ref, out_ref):
    # x_ref:   (9, TN)  batch-in-lanes input (one sample per lane column)
    # w_ref:   (4, 9)   folded conv+fc weight (transposed)
    # b_ref:   (4, 1)   folded bias (column)
    # out_ref: (4, TN)  log-probabilities, batch-in-lanes (lane-dense stores)
    xt = x_ref[...]
    wt = w_ref[...]
    tn = xt.shape[1]

    # z^T = W_fold^T @ x^T + b as 9 broadcast FMAs on the VPU.  The MXU would
    # be <1% utilized for this K=9, Nout=4 contraction and only adds per-tile
    # push/pop latency in a memory-bound kernel.
    acc = jnp.broadcast_to(b_ref[...], (4, tn)).astype(jnp.float32)
    for k in range(9):  # statically unrolled, 9 tiny FMAs
        acc = acc + wt[:, k:k + 1] * xt[k:k + 1, :]

    # Numerically stable log-softmax over the 4 classes (sublane axis).
    # Padded lanes of a partial last block may compute garbage/NaN, but each
    # lane is independent (reductions are along sublanes only) and Pallas
    # masks their writeback, so valid lanes are unaffected.
    m = jnp.max(acc, axis=0, keepdims=True)
    s = acc - m
    lse = jnp.log(jnp.sum(jnp.exp(s), axis=0, keepdims=True))
    out_ref[...] = s - lse


def _fold_params(conv_w, conv_b, fc_w, fc_b):
    """Fold conv (as im2col matmul) + fc into a single (9,4) weight and (1,4) bias."""
    # Static im2col selection matrix P: patches[n, p*4+k] = x_flat[n, src]
    # where src = (ph+kh)*3 + (pw+kw), p = ph*2+pw, k = kh*2+kw.
    P = np.zeros((9, 16), dtype=np.float32)
    for ph in range(2):
        for pw in range(2):
            p = ph * 2 + pw
            for kh in range(2):
                for kw in range(2):
                    k = kh * 2 + kw
                    P[(ph + kh) * 3 + (pw + kw), p * 4 + k] = 1.0
    P = jnp.asarray(P)

    # Conv weight (6,1,2,2) -> block-diagonal (16,24): y[n, p*6+c]
    wc_flat = conv_w.reshape(6, 4)                                  # (c, k)
    wc_big = jnp.kron(jnp.eye(4, dtype=jnp.float32), wc_flat.T)     # (16, 24)
    bc_row = jnp.tile(conv_b, 4).reshape(1, 24)                     # per (p*6+c)

    # PyTorch flatten of (N,6,2,2) uses index c*4+p; our y uses p*6+c, so
    # permute the FC weight:  wf2t[p*6+c, o] = fc_w[o, c*4+p]
    wf_r = fc_w.reshape(4, 6, 4)                                    # (o, c, p)
    wf2t = jnp.transpose(wf_r, (2, 1, 0)).reshape(24, 4)
    bf_row = fc_b.reshape(1, 4)

    w_fold = P @ wc_big @ wf2t                                      # (9, 4)
    b_fold = bc_row @ wf2t + bf_row                                 # (1, 4)
    return w_fold, b_fold


def _pick_tile(n, tile_n):
    """Lane-aligned batch tile.

    - tiny batch (<=128): one full-extent block (any size allowed),
    - otherwise: multiple of 128, at least 2 grid steps (so both v7x
      TensorCores get work), capped at tile_n (VMEM budget).
    """
    tile_n = max(_LANE, (int(tile_n) // _LANE) * _LANE)
    if n <= _LANE:
        return n
    half = (((n + 1) // 2) + _LANE - 1) // _LANE * _LANE
    return min(tile_n, half)


def net_forward(x, conv_w, conv_b, fc_w, fc_b, tile_n=32768):
    """x: (N, 1, 3, 3) NCHW float32.  Returns (N, 4) log-probabilities."""
    N = x.shape[0]
    # One-time layout change to batch-in-lanes.  (A producer that already
    # emits (9, N) would skip this HBM pass; same for the final transpose.)
    x_t = x.reshape(N, 9).T.astype(jnp.float32)                     # (9, N)

    w_fold, b_fold = _fold_params(conv_w, conv_b, fc_w, fc_b)
    w_t = w_fold.T                                                  # (4, 9)
    b_col = b_fold.reshape(4, 1)                                    # (4, 1)

    tn = _pick_tile(N, tile_n)
    grid = (pl.cdiv(N, tn),)

    # VMEM per grid step (double-buffered):
    #   x block  (9 -> 16 sublanes) x tn lanes x 4 B = 64*tn
    #   out block(4 ->  8 sublanes) x tn lanes x 4 B = 32*tn
    # => ~192*tn bytes total (+~16 KiB of weight/bias blocks);
    # tn=32768 -> ~6.3 MiB, well inside the 32 MiB limit set below on all gens.
    out_t = pl.pallas_call(
        net_kernel,
        out_shape=jax.ShapeDtypeStruct((4, N), jnp.float32),
        grid=grid,
        in_specs=[
            pl.BlockSpec((9, tn), lambda i: (0, i)),   # batch-tiled input (lanes)
            pl.BlockSpec((4, 9), lambda i: (0, 0)),    # constant weight block
            pl.BlockSpec((4, 1), lambda i: (0, 0)),    # constant bias block
        ],
        out_specs=pl.BlockSpec((4, tn), lambda i: (0, i)),
        compiler_params=pltpu.CompilerParams(
            dimension_semantics=("parallel",),
            vmem_limit_bytes=32 * 1024 * 1024,
        ),
    )(x_t, w_t, b_col)

    # Transpose back to the PyTorch (N, 4) layout; consumers that accept the
    # class-major (4, N) layout can use out_t directly and skip this pass.
    return out_t.T


def reference_forward(x, conv_w, conv_b, fc_w, fc_b):
    """Pure-JAX reference matching PyTorch semantics exactly."""
    N = x.shape[0]
    conv = jax.lax.conv_general_dilated(
        x, conv_w, window_strides=(1, 1), padding="VALID",
        dimension_numbers=("NCHW", "OIHW", "NCHW"),
    ) + conv_b.reshape(1, 6, 1, 1)
    y = conv.reshape(N, 24)                 # same as torch .view(-1, 24)
    z = y @ fc_w.T + fc_b
    return jax.nn.log_softmax(z, axis=1)


if __name__ == "__main__":
    key = jax.random.PRNGKey(0)
    k_x, k_cw, k_cb, k_fw, k_fb = jax.random.split(key, 5)

    # Deterministic parameter init (shapes from the module __init__).
    conv_w = jax.random.normal(k_cw, (6, 1, 2, 2), dtype=jnp.float32) * 0.5
    conv_b = jax.random.normal(k_cb, (6,), dtype=jnp.float32) * 0.1
    fc_w = jax.random.normal(k_fw, (4, 24), dtype=jnp.float32) * 0.2
    fc_b = jax.random.normal(k_fb, (4,), dtype=jnp.float32) * 0.1

    # Case 1: the module's nominal small batch (single full-extent block).
    N = 2
    x = jax.random.normal(k_x, (N, 1, 3, 3), dtype=jnp.float32)
    out = net_forward(x, conv_w, conv_b, fc_w, fc_b)
    jax.block_until_ready(out)
    ref = reference_forward(x, conv_w, conv_b, fc_w, fc_b)
    assert out.shape == (N, 4)
    assert jnp.allclose(out, ref, atol=1e-5, rtol=1e-5), (out, ref)

    # Case 2: exercise the batch grid (3 steps, partial masked last tile).
    N2 = 300
    x2 = jax.random.normal(jax.random.PRNGKey(1), (N2, 1, 3, 3), dtype=jnp.float32)
    out2 = net_forward(x2, conv_w, conv_b, fc_w, fc_b, tile_n=128)
    jax.block_until_ready(out2)
    ref2 = reference_forward(x2, conv_w, conv_b, fc_w, fc_b)
    assert out2.shape == (N2, 4)
    assert jnp.allclose(out2, ref2, atol=1e-5, rtol=1e-5), (out2, ref2)

    print("KERNEL_OK")
</pallas_src>

<mosaic_0001>
module attributes {stable_mosaic.version = 11 : i64} {
  func.func @net_kernel(%arg0: i32, %arg1: memref<9x2xf32, #tpu.memory_space<vmem>>, %arg2: memref<4x9xf32, #tpu.memory_space<vmem>>, %arg3: memref<4x1xf32, #tpu.memory_space<vmem>>, %arg4: memref<4x2xf32, #tpu.memory_space<vmem>>) attributes {dimension_semantics = [#tpu.dimension_semantics<parallel>], iteration_bounds = array<i64: 1>, scalar_prefetch = 0 : i64, scratch_operands = 0 : i64, tpu.core_type = #tpu.core_type<tc>, window_params = [{transform_indices = @transform_0, window_bounds = array<i64: 9, 2>}, {pipeline_mode = #tpu.pipeline_mode<synchronous>, transform_indices = @transform_1, window_bounds = array<i64: 4, 9>}, {pipeline_mode = #tpu.pipeline_mode<synchronous>, transform_indices = @transform_2, window_bounds = array<i64: 4, 1>}, {transform_indices = @transform_3, window_bounds = array<i64: 4, 2>}]} {
    %c0 = arith.constant 0 : index
    %c0_0 = arith.constant 0 : index
    %0 = vector.load %arg1[%c0, %c0_0] : memref<9x2xf32, #tpu.memory_space<vmem>>, vector<9x2xf32>
    %c0_1 = arith.constant 0 : index
    %c0_2 = arith.constant 0 : index
    %1 = vector.load %arg2[%c0_1, %c0_2] : memref<4x9xf32, #tpu.memory_space<vmem>>, vector<4x9xf32>
    %c0_3 = arith.constant 0 : index
    %c0_4 = arith.constant 0 : index
    %2 = vector.load %arg3[%c0_3, %c0_4] : memref<4x1xf32, #tpu.memory_space<vmem>>, vector<4x1xf32>
    %3 = vector.shape_cast %2 : vector<4x1xf32> to vector<4x1xf32>
    %4 = vector.broadcast %3 : vector<4x1xf32> to vector<4x2xf32>
    %5 = vector.extract_strided_slice %1 {offsets = [0, 0], sizes = [4, 1], strides = [1, 1]} : vector<4x9xf32> to vector<4x1xf32>
    %6 = vector.extract_strided_slice %0 {offsets = [0, 0], sizes = [1, 2], strides = [1, 1]} : vector<9x2xf32> to vector<1x2xf32>
    %7 = vector.broadcast %5 : vector<4x1xf32> to vector<4x2xf32>
    %8 = vector.broadcast %6 : vector<1x2xf32> to vector<4x2xf32>
    %9 = arith.mulf %7, %8 : vector<4x2xf32>
    %10 = arith.addf %4, %9 : vector<4x2xf32>
    %11 = vector.extract_strided_slice %1 {offsets = [0, 1], sizes = [4, 1], strides = [1, 1]} : vector<4x9xf32> to vector<4x1xf32>
    %12 = vector.extract_strided_slice %0 {offsets = [1, 0], sizes = [1, 2], strides = [1, 1]} : vector<9x2xf32> to vector<1x2xf32>
    %13 = vector.broadcast %11 : vector<4x1xf32> to vector<4x2xf32>
    %14 = vector.broadcast %12 : vector<1x2xf32> to vector<4x2xf32>
    %15 = arith.mulf %13, %14 : vector<4x2xf32>
    %16 = arith.addf %10, %15 : vector<4x2xf32>
    %17 = vector.extract_strided_slice %1 {offsets = [0, 2], sizes = [4, 1], strides = [1, 1]} : vector<4x9xf32> to vector<4x1xf32>
    %18 = vector.extract_strided_slice %0 {offsets = [2, 0], sizes = [1, 2], strides = [1, 1]} : vector<9x2xf32> to vector<1x2xf32>
    %19 = vector.broadcast %17 : vector<4x1xf32> to vector<4x2xf32>
    %20 = vector.broadcast %18 : vector<1x2xf32> to vector<4x2xf32>
    %21 = arith.mulf %19, %20 : vector<4x2xf32>
    %22 = arith.addf %16, %21 : vector<4x2xf32>
    %23 = vector.extract_strided_slice %1 {offsets = [0, 3], sizes = [4, 1], strides = [1, 1]} : vector<4x9xf32> to vector<4x1xf32>
    %24 = vector.extract_strided_slice %0 {offsets = [3, 0], sizes = [1, 2], strides = [1, 1]} : vector<9x2xf32> to vector<1x2xf32>
    %25 = vector.broadcast %23 : vector<4x1xf32> to vector<4x2xf32>
    %26 = vector.broadcast %24 : vector<1x2xf32> to vector<4x2xf32>
    %27 = arith.mulf %25, %26 : vector<4x2xf32>
    %28 = arith.addf %22, %27 : vector<4x2xf32>
    %29 = vector.extract_strided_slice %1 {offsets = [0, 4], sizes = [4, 1], strides = [1, 1]} : vector<4x9xf32> to vector<4x1xf32>
    %30 = vector.extract_strided_slice %0 {offsets = [4, 0], sizes = [1, 2], strides = [1, 1]} : vector<9x2xf32> to vector<1x2xf32>
    %31 = vector.broadcast %29 : vector<4x1xf32> to vector<4x2xf32>
    %32 = vector.broadcast %30 : vector<1x2xf32> to vector<4x2xf32>
    %33 = arith.mulf %31, %32 : vector<4x2xf32>
    %34 = arith.addf %28, %33 : vector<4x2xf32>
    %35 = vector.extract_strided_slice %1 {offsets = [0, 5], sizes = [4, 1], strides = [1, 1]} : vector<4x9xf32> to vector<4x1xf32>
    %36 = vector.extract_strided_slice %0 {offsets = [5, 0], sizes = [1, 2], strides = [1, 1]} : vector<9x2xf32> to vector<1x2xf32>
    %37 = vector.broadcast %35 : vector<4x1xf32> to vector<4x2xf32>
    %38 = vector.broadcast %36 : vector<1x2xf32> to vector<4x2xf32>
    %39 = arith.mulf %37, %38 : vector<4x2xf32>
    %40 = arith.addf %34, %39 : vector<4x2xf32>
    %41 = vector.extract_strided_slice %1 {offsets = [0, 6], sizes = [4, 1], strides = [1, 1]} : vector<4x9xf32> to vector<4x1xf32>
    %42 = vector.extract_strided_slice %0 {offsets = [6, 0], sizes = [1, 2], strides = [1, 1]} : vector<9x2xf32> to vector<1x2xf32>
    %43 = vector.broadcast %41 : vector<4x1xf32> to vector<4x2xf32>
    %44 = vector.broadcast %42 : vector<1x2xf32> to vector<4x2xf32>
    %45 = arith.mulf %43, %44 : vector<4x2xf32>
    %46 = arith.addf %40, %45 : vector<4x2xf32>
    %47 = vector.extract_strided_slice %1 {offsets = [0, 7], sizes = [4, 1], strides = [1, 1]} : vector<4x9xf32> to vector<4x1xf32>
    %48 = vector.extract_strided_slice %0 {offsets = [7, 0], sizes = [1, 2], strides = [1, 1]} : vector<9x2xf32> to vector<1x2xf32>
    %49 = vector.broadcast %47 : vector<4x1xf32> to vector<4x2xf32>
    %50 = vector.broadcast %48 : vector<1x2xf32> to vector<4x2xf32>
    %51 = arith.mulf %49, %50 : vector<4x2xf32>
    %52 = arith.addf %46, %51 : vector<4x2xf32>
    %53 = vector.extract_strided_slice %1 {offsets = [0, 8], sizes = [4, 1], strides = [1, 1]} : vector<4x9xf32> to vector<4x1xf32>
    %54 = vector.extract_strided_slice %0 {offsets = [8, 0], sizes = [1, 2], strides = [1, 1]} : vector<9x2xf32> to vector<1x2xf32>
    %55 = vector.broadcast %53 : vector<4x1xf32> to vector<4x2xf32>
    %56 = vector.broadcast %54 : vector<1x2xf32> to vector<4x2xf32>
    %57 = arith.mulf %55, %56 : vector<4x2xf32>
    %58 = arith.addf %52, %57 : vector<4x2xf32>
    %cst = arith.constant dense<0xFF800000> : vector<2xf32>
    %59 = vector.multi_reduction <maximumf>, %58, %cst [0] : vector<4x2xf32> to vector<2xf32>
    %60 = vector.shape_cast %59 : vector<2xf32> to vector<1x2xf32>
    %61 = vector.broadcast %60 : vector<1x2xf32> to vector<4x2xf32>
    %62 = arith.subf %58, %61 : vector<4x2xf32>
    %63 = math.exp %62 : vector<4x2xf32>
    %cst_5 = arith.constant dense<0.000000e+00> : vector<2xf32>
    %64 = vector.multi_reduction <add>, %63, %cst_5 [0] : vector<4x2xf32> to vector<2xf32>
    %65 = vector.shape_cast %64 : vector<2xf32> to vector<1x2xf32>
    %66 = math.log %65 : vector<1x2xf32>
    %67 = vector.broadcast %66 : vector<1x2xf32> to vector<4x2xf32>
    %68 = arith.subf %62, %67 : vector<4x2xf32>
    %c0_6 = arith.constant 0 : index
    %c0_7 = arith.constant 0 : index
    %69 = vector.load %arg4[%c0_6, %c0_7] : memref<4x2xf32, #tpu.memory_space<vmem>>, vector<4x2xf32>
    tpu.vector_store %arg4[%c0_6, %c0_7], %68 {strides = array<i32>} : memref<4x2xf32, #tpu.memory_space<vmem>>, vector<4x2xf32>,
    return
  }
  func.func @transform_0(%arg0: i32) -> (i32, i32) {
    %c0_i32 = arith.constant 0 : i32
    %c0_i32_0 = arith.constant 0 : i32
    return %c0_i32, %arg0 : i32, i32
  }
  func.func @transform_1(%arg0: i32) -> (i32, i32) {
    %c0_i32 = arith.constant 0 : i32
    %c0_i32_0 = arith.constant 0 : i32
    %c0_i32_1 = arith.constant 0 : i32
    return %c0_i32, %c0_i32_0 : i32, i32
  }
  func.func @transform_2(%arg0: i32) -> (i32, i32) {
    %c0_i32 = arith.constant 0 : i32
    %c0_i32_0 = arith.constant 0 : i32
    %c0_i32_1 = arith.constant 0 : i32
    return %c0_i32, %c0_i32_0 : i32, i32
  }
  func.func @transform_3(%arg0: i32) -> (i32, i32) {
    %c0_i32 = arith.constant 0 : i32
    %c0_i32_0 = arith.constant 0 : i32
    return %c0_i32, %arg0 : i32, i32
  }
}

</mosaic_0001>

<llo_original>
// kernel: tpu_custom_call.1
$region0: #{tpu_custom_call.1}
  #allocation0 [shape = 'u32[]', space=smem, size = 0x4, offset = 0x4, fixed_abs, tag = 'smem constant byte address 0x4 - core index']
  #allocation1 [shape = 'u32[144,128]{1,0:T(1,128)}', space=vmem, size = 0x12000, scoped, tag = 'internal scratch']
  %s0 = inlined_call_operand.vmem [shape: f32[9,2], index: 0, kind: input, shape index: {}]
  %s1 = inlined_call_operand.vmem [shape: f32[4,9], index: 1, kind: input, shape index: {}]
  %s2 = inlined_call_operand.vmem [shape: f32[4,1], index: 2, kind: input, shape index: {}]
  %s3 = inlined_call_operand.vmem [shape: f32[4,2], index: 3, kind: output, shape index: {}]
  %s4 = sld [smem:[#allocation0]]
  $region22: #{tpu_custom_call.1} parent=0
    _
  %s6 = ssub.s32 1, %s4
  %s7 = scalar_select 0, %s6, %s4
  // Predicated region
  $region2: #{tpu_custom_call.1} parent=0 // pred_check
    _
  $region3: #{tpu_custom_call.1} parent=0 // pred_check_branch
    %9 = sbr.rel (0) target = $region5
  $region4: #{tpu_custom_call.1} parent=0 // pred_region
    _
  $region5: #{tpu_custom_call.1} parent=0 // pred_fallthru
    _
  // Predicated region
  $region6: #{tpu_custom_call.1} parent=0 // pred_check
    _
  $region7: #{tpu_custom_call.1} parent=0 // pred_check_branch
    %11 = sbr.rel (0) target = $region9
  $region8: #{tpu_custom_call.1} parent=0 // pred_region
    _
  $region9: #{tpu_custom_call.1} parent=0 // pred_fallthru
    _
  // Predicated region
  $region10: #{tpu_custom_call.1} parent=0 // pred_check
    _
  $region11: #{tpu_custom_call.1} parent=0 // pred_check_branch
    %13 = sbr.rel (0) target = $region13
  $region12: #{tpu_custom_call.1} parent=0 // pred_region
    _
  $region13: #{tpu_custom_call.1} parent=0 // pred_fallthru
    _
  %v14 = vld [vmem:[%s0] sm:$0xff]
  %v15 = vld [vmem:[%s0 + $0x8] sm:$0x1]
  %v16 = vld [vmem:[%s1] sm:$0xf]
  %v17 = vld [vmem:[%s2] sm:$0xf]
  %19 = vset.pattern.permute.xlu0 0
  %20 = vperm.xlu0 %19, %v17
  %v21 = vpop.permute.xlu0 %20
  %24 = vset.pattern.permute.xlu0 0
  %25 = vperm.xlu0 %24, %v16
  %v26 = vpop.permute.xlu0 %25
  %v28 = vlaneseq
  %v29 = vshrl.u32 %v28, 7
  %v30 = vsub.s32 0, %v29
  %v31 = vrot.slane %v14, %v30
  %v32 = vmul.f32 %v26, %v31
  %v33 = vadd.f32 %v21, %v32
  %34 = vset.pattern.permute.xlu0 1
  %35 = vperm.xlu0 %34, %v16
  %v36 = vpop.permute.xlu0 %35
  %v38 = vlaneseq
  %v39 = vshrl.u32 %v38, 7
  %v40 = vsub.s32 1, %v39
  %v41 = vrot.slane %v14, %v40
  %v42 = vmul.f32 %v36, %v41
  %v43 = vadd.f32 %v33, %v42
  %44 = vset.pattern.permute.xlu0 2
  %45 = vperm.xlu0 %44, %v16
  %v46 = vpop.permute.xlu0 %45
  %v48 = vlaneseq
  %v49 = vshrl.u32 %v48, 7
  %v50 = vsub.s32 2, %v49
  %v51 = vrot.slane %v14, %v50
  %v52 = vmul.f32 %v46, %v51
  %v53 = vadd.f32 %v43, %v52
  %54 = vset.pattern.permute.xlu0 3
  %55 = vperm.xlu0 %54, %v16
  %v56 = vpop.permute.xlu0 %55
  %v58 = vlaneseq
  %v59 = vshrl.u32 %v58, 7
  %v60 = vsub.s32 3, %v59
  %v61 = vrot.slane %v14, %v60
  %v62 = vmul.f32 %v56, %v61
  %v63 = vadd.f32 %v53, %v62
  %64 = vset.pattern.permute.xlu0 4
  %65 = vperm.xlu0 %64, %v16
  %v66 = vpop.permute.xlu0 %65
  %v68 = vlaneseq
  %v69 = vshrl.u32 %v68, 7
  %v70 = vsub.s32 4, %v69
  %v71 = vrot.slane %v14, %v70
  %v72 = vmul.f32 %v66, %v71
  %v73 = vadd.f32 %v63, %v72
  %74 = vset.pattern.permute.xlu0 5
  %75 = vperm.xlu0 %74, %v16
  %v76 = vpop.permute.xlu0 %75
  %v78 = vlaneseq
  %v79 = vshrl.u32 %v78, 7
  %v80 = vsub.s32 5, %v79
  %v81 = vrot.slane %v14, %v80
  %v82 = vmul.f32 %v76, %v81
  %v83 = vadd.f32 %v73, %v82
  %84 = vset.pattern.permute.xlu0 6
  %85 = vperm.xlu0 %84, %v16
  %v86 = vpop.permute.xlu0 %85
  %v88 = vlaneseq
  %v89 = vshrl.u32 %v88, 7
  %v90 = vsub.s32 6, %v89
  %v91 = vrot.slane %v14, %v90
  %v92 = vmul.f32 %v86, %v91
  %v93 = vadd.f32 %v83, %v92
  %94 = vset.pattern.permute.xlu0 7
  %95 = vperm.xlu0 %94, %v16
  %v96 = vpop.permute.xlu0 %95
  %v98 = vlaneseq
  %v99 = vshrl.u32 %v98, 7
  %v100 = vsub.s32 7, %v99
  %v101 = vrot.slane %v14, %v100
  %v102 = vmul.f32 %v96, %v101
  %v103 = vadd.f32 %v93, %v102
  %104 = vset.pattern.permute.xlu0 8
  %105 = vperm.xlu0 %104, %v16
  %v106 = vpop.permute.xlu0 %105
  %v108 = vlaneseq
  %v109 = vshrl.u32 %v108, 7
  %v110 = vsub.s32 0, %v109
  %v111 = vrot.slane %v15, %v110
  %v112 = vmul.f32 %v106, %v111
  %v113 = vadd.f32 %v103, %v112
  %vm114 = vcmask 11264
  %v115 = vsel %vm114, %v113, -inf
  %v116 = vrot.slane %v115, 4
  %v117 = vmax.f32 %v115, %v116
  %v118 = vrot.slane %v117, 2
  %v119 = vmax.f32 %v117, %v118
  %v120 = vrot.slane %v119, 1
  %v121 = vmax.f32 %v119, %v120
  %v122 = vsub.f32 %v113, %v121
  %v123 = vmul.f32 %v122, 1.442695
  %v124 = vpow.pop %v123
  %v125 = vsel %vm114, %v124, 0.0
  %v126 = vrot.slane %v125, 4
  %v127 = vadd.f32 %v125, %v126
  %v128 = vrot.slane %v127, 2
  %v129 = vadd.f32 %v127, %v128
  %v130 = vrot.slane %v129, 1
  %v131 = vadd.f32 %v129, %v130
  %v132 = vlog2.pop %v131
  %v133 = vmul.f32 %v132, 0.6931472
  %v134 = vsub.f32 %v122, %v133
  %135 = vst.msk [vmem:[%s3] sm:$0xf] %vm114, %v134
  // Predicated region
  $region14: #{tpu_custom_call.1} parent=0 // pred_check
    _
  $region15: #{tpu_custom_call.1} parent=0 // pred_check_branch
    %137 = sbr.rel (0) target = $region17
  $region16: #{tpu_custom_call.1} parent=0 // pred_region
    _
  $region17: #{tpu_custom_call.1} parent=0 // pred_fallthru
    _
  // Predicated region
  $region18: #{tpu_custom_call.1} parent=0 // pred_check
    _
  $region19: #{tpu_custom_call.1} parent=0 // pred_check_branch
    %139 = sbr.rel (0) target = $region21
  $region20: #{tpu_custom_call.1} parent=0 // pred_region
    _
  $region21: #{tpu_custom_call.1} parent=0 // pred_fallthru
    _

</llo_original>
